<compile_context>
chip_gen: v6e
topology: v6e:2x2x1
jax: 0.10.0
libtpu: 0.0.40
codegen_flags: <defaults>
</compile_context>

<pallas_src>
import math

import jax
import jax.numpy as jnp
from jax.experimental import pallas as pl
from jax.experimental.pallas import tpu as pltpu

_LANE = 128
_TARGET_BLOCK_BYTES = 1 << 20  # ~1 MiB per block buffer (v5e-safe, ~85% roofline)
_SUBLANE = {4: 8, 2: 16, 1: 32}  # dtype itemsize -> sublane packing


def _round_up(n, m):
    return ((n + m - 1) // m) * m


def _drop_path_scale_kernel(x_ref, s_ref, o_ref):
    """out = x * scale, scale broadcast per sample (scale = 1/keep_prob or 0)."""
    o_ref[...] = (x_ref[...].astype(jnp.float32) * s_ref[...]).astype(o_ref.dtype)


def _blocks_3d(B, R, itemsize, sub, target):
    """Block sizes for the lane-aligned (B, R, 128) view. Returns (tb, tr)."""
    row_bytes = _LANE * itemsize
    sample_foot = _round_up(R, sub) * row_bytes  # VMEM footprint of one sample
    if sample_foot <= target:
        # Whole samples fit: pack several per block to amortize per-step cost.
        tr = R  # full dim -> always a legal block dim
        tb = min(B, max(1, target // sample_foot))
        return tb, tr
    # Large samples: one sample per block, tile rows in sublane multiples.
    tb = 1
    tr = max(sub, ((target // row_bytes) // sub) * sub)
    return tb, tr


def _blocks_2d(B, F, itemsize, sub, target):
    """Block sizes for the general (B, F) view (F not lane-aligned)."""
    f_pad = _round_up(F, _LANE) * itemsize  # padded per-sample row footprint
    if sub * f_pad <= target:
        # Whole (ragged) feature rows fit: pack samples per block.
        tf = F  # full dim -> legal even though F % 128 != 0 (tail store masked)
        tb = min(B, max(1, target // f_pad))
        if tb < B:
            tb = max(sub, (tb // sub) * sub)  # sublane-multiple for legality/density
        return tb, tf
    # Large samples: sub rows per block, feature dim tiled in 128-lane multiples.
    tb = min(B, sub)
    row_budget = target // (_round_up(tb, sub) * itemsize)
    tf = max(_LANE, (row_budget // _LANE) * _LANE)
    return tb, tf


def drop_path(x, drop_prob: float = 0.0, training: bool = False, *, key=None,
              target_block_bytes: int = _TARGET_BLOCK_BYTES):
    """Pallas implementation of DropPath.forward for any >=1D input (NCHW etc.)."""
    if drop_prob == 0.0 or not training:
        return x
    if key is None:
        # Avoid the silent-reuse foot-gun: the stochastic path needs fresh keys.
        raise ValueError("drop_path(training=True, drop_prob>0) requires an explicit `key`.")

    keep_prob = 1.0 - drop_prob
    B = x.shape[0]
    F = math.prod(x.shape[1:]) if x.ndim > 1 else 1

    # Per-sample Bernoulli keep mask, same recipe as the PyTorch reference:
    # floor(keep_prob + U[0,1)) in {0,1}; folded into a per-sample f32 scale.
    u = jax.random.uniform(key, (B,), dtype=jnp.float32)
    keep = jnp.floor(jnp.float32(keep_prob) + u)            # 0.0 or 1.0
    scale = keep / jnp.float32(keep_prob)                    # inv_keep_prob or 0.0

    itemsize = jnp.dtype(x.dtype).itemsize
    sub = _SUBLANE.get(itemsize, 8)

    if F % _LANE == 0 and F > 0:
        # Lane-aligned path: free reshape to (B, R, 128), fully dense stores.
        R = F // _LANE
        tb, tr = _blocks_3d(B, R, itemsize, sub, target_block_bytes)
        xv = x.reshape(B, R, _LANE)
        sv = scale.reshape(B, 1, 1)
        grid = (pl.cdiv(B, tb), pl.cdiv(R, tr))
        in_specs = [
            pl.BlockSpec((tb, tr, _LANE), lambda i, j: (i, j, 0)),
            pl.BlockSpec((tb, 1, 1), lambda i, j: (i, 0, 0)),
        ]
        out_specs = pl.BlockSpec((tb, tr, _LANE), lambda i, j: (i, j, 0))
        out_shape = jax.ShapeDtypeStruct((B, R, _LANE), x.dtype)
    else:
        # General path: run directly on the (B, F) view; no pad / slice round-trip.
        tb, tf = _blocks_2d(B, F, itemsize, sub, target_block_bytes)
        xv = x.reshape(B, F)
        sv = scale.reshape(B, 1)
        grid = (pl.cdiv(B, tb), pl.cdiv(F, tf))
        in_specs = [
            pl.BlockSpec((tb, tf), lambda i, j: (i, j)),
            pl.BlockSpec((tb, 1), lambda i, j: (i, 0)),
        ]
        out_specs = pl.BlockSpec((tb, tf), lambda i, j: (i, j))
        out_shape = jax.ShapeDtypeStruct((B, F), x.dtype)

    out = pl.pallas_call(
        _drop_path_scale_kernel,
        out_shape=out_shape,
        grid=grid,
        in_specs=in_specs,
        out_specs=out_specs,
        compiler_params=pltpu.CompilerParams(
            dimension_semantics=("parallel", "parallel"),
        ),
        cost_estimate=pl.CostEstimate(
            flops=B * F,
            transcendentals=0,
            bytes_accessed=2 * B * F * itemsize + B * 4,
        ),
    )(xv, sv)

    return out.reshape(x.shape)


class DropPath:
    """Mirror of the PyTorch module (no parameters)."""

    def __init__(self, drop_prob=None):
        self.drop_prob = drop_prob
        self.training = True

    def __call__(self, x, key=None):
        return drop_path(x, self.drop_prob or 0.0, self.training, key=key)


def _check_drop_path(x, y, keep_prob):
    """Each sample must be all-zero or exactly x / keep_prob (up to f32 ulps)."""
    for b in range(x.shape[0]):
        yb = y[b]
        zero = bool(jnp.all(yb == 0.0))
        scaled = bool(jnp.allclose(
            yb.astype(jnp.float32),
            x[b].astype(jnp.float32) / jnp.float32(keep_prob),
            rtol=2e-2 if x.dtype == jnp.bfloat16 else 1e-5,
            atol=1e-2 if x.dtype == jnp.bfloat16 else 1e-6))
        assert zero or scaled, "per-sample DropPath semantics violated"


if __name__ == "__main__":
    root = jax.random.PRNGKey(0)
    kx, kx2, kx3, kd1, kd2, kd3 = jax.random.split(root, 6)

    drop_prob = 0.25
    keep_prob = 1.0 - drop_prob
    module = DropPath(drop_prob=drop_prob)

    # 1) Demo NCHW shape, F % 128 == 0 -> lane-aligned (B, R, 128) path.
    x = jax.random.normal(kx, (2, 4, 16, 16), dtype=jnp.float32)
    module.training = True
    y = jax.block_until_ready(module(x, key=kd1))
    _check_drop_path(x, y, keep_prob)

    # 2) Ragged feature size (F = 189, not a multiple of 128) -> (B, F) path,
    #    no pad/slice round-trip; also a non-multiple-of-8 batch.
    x2 = jax.random.normal(kx2, (5, 3, 7, 9), dtype=jnp.float32)
    y2 = jax.block_until_ready(module(x2, key=kd2))
    _check_drop_path(x2, y2, keep_prob)

    # 3) bf16 input (exercises the f32 upcast-multiply-downcast and the
    #    sublane-packing-aware tile rounding).
    x3 = jax.random.normal(kx3, (2, 4, 16, 16), dtype=jnp.bfloat16)
    y3 = jax.block_until_ready(module(x3, key=kd3))
    _check_drop_path(x3, y3, keep_prob)

    # 4) Eval path: identity (matches the PyTorch early-return).
    module.training = False
    y_eval = jax.block_until_ready(module(x))
    assert bool(jnp.allclose(y_eval, x))

    print("KERNEL_OK")
</pallas_src>

<mosaic_0001>
module attributes {stable_mosaic.version = 11 : i64} {
  func.func @_drop_path_scale_kernel(%arg0: i32, %arg1: i32, %arg2: memref<2x8x128xf32, #tpu.memory_space<vmem>>, %arg3: memref<2x1x1xf32, #tpu.memory_space<vmem>>, %arg4: memref<2x8x128xf32, #tpu.memory_space<vmem>>) attributes {dimension_semantics = [#tpu.dimension_semantics<parallel>, #tpu.dimension_semantics<parallel>], iteration_bounds = array<i64: 1, 1>, scalar_prefetch = 0 : i64, scratch_operands = 0 : i64, tpu.core_type = #tpu.core_type<tc>, window_params = [{transform_indices = @transform_0, window_bounds = array<i64: 2, 8, 128>}, {transform_indices = @transform_1, window_bounds = array<i64: 2, 1, 1>}, {transform_indices = @transform_2, window_bounds = array<i64: 2, 8, 128>}]} {
    %c0 = arith.constant 0 : index
    %c0_0 = arith.constant 0 : index
    %c0_1 = arith.constant 0 : index
    %0 = vector.load %arg2[%c0, %c0_0, %c0_1] : memref<2x8x128xf32, #tpu.memory_space<vmem>>, vector<2x8x128xf32>
    %c0_2 = arith.constant 0 : index
    %c0_3 = arith.constant 0 : index
    %c0_4 = arith.constant 0 : index
    %1 = vector.load %arg3[%c0_2, %c0_3, %c0_4] : memref<2x1x1xf32, #tpu.memory_space<vmem>>, vector<2x1x1xf32>
    %2 = vector.broadcast %1 : vector<2x1x1xf32> to vector<2x8x128xf32>
    %3 = arith.mulf %0, %2 : vector<2x8x128xf32>
    %c0_5 = arith.constant 0 : index
    %c0_6 = arith.constant 0 : index
    %c0_7 = arith.constant 0 : index
    %4 = vector.load %arg4[%c0_5, %c0_6, %c0_7] : memref<2x8x128xf32, #tpu.memory_space<vmem>>, vector<2x8x128xf32>
    tpu.vector_store %arg4[%c0_5, %c0_6, %c0_7], %3 {strides = array<i32>} : memref<2x8x128xf32, #tpu.memory_space<vmem>>, vector<2x8x128xf32>,
    return
  }
  func.func @transform_0(%arg0: i32, %arg1: i32) -> (i32, i32, i32) {
    %c0_i32 = arith.constant 0 : i32
    %c0_i32_0 = arith.constant 0 : i32
    return %arg0, %arg1, %c0_i32 : i32, i32, i32
  }
  func.func @transform_1(%arg0: i32, %arg1: i32) -> (i32, i32, i32) {
    %c0_i32 = arith.constant 0 : i32
    %c0_i32_0 = arith.constant 0 : i32
    %c0_i32_1 = arith.constant 0 : i32
    return %arg0, %c0_i32, %c0_i32_0 : i32, i32, i32
  }
  func.func @transform_2(%arg0: i32, %arg1: i32) -> (i32, i32, i32) {
    %c0_i32 = arith.constant 0 : i32
    %c0_i32_0 = arith.constant 0 : i32
    return %arg0, %arg1, %c0_i32 : i32, i32, i32
  }
}

</mosaic_0001>

<llo_original>
// kernel: tpu_custom_call.1
$region0: #{tpu_custom_call.1}
  #allocation0 [shape = 'u32[]', space=smem, size = 0x4, offset = 0x4, fixed_abs, tag = 'smem constant byte address 0x4 - core index']
  #allocation1 [shape = 'u32[144,128]{1,0:T(1,128)}', space=vmem, size = 0x12000, scoped, tag = 'internal scratch']
  %s0 = inlined_call_operand.hbm [shape: f32[2,8,128], index: 0, kind: input, shape index: {}]
  %s1 = inlined_call_operand.vmem [shape: f32[2,1,1], index: 1, kind: input, shape index: {}]
  %s2 = inlined_call_operand.hbm [shape: f32[2,8,128], index: 2, kind: output, shape index: {}]
  %s3 = sld [smem:[#allocation0]]
  $region22: #{tpu_custom_call.1} parent=0
    _
  %s5 = ssub.s32 1, %s3
  %s6 = scalar_select 0, %s5, %s3
  $region1: #{tpu_custom_call.1} parent=0
    #allocation2 [shape = 'u8[8192]{0}', space=vmem, size = 0x2000, scoped, tag = 'input window, operand 0, single buffered']
    #allocation3 [shape = 's32[1]{0}', space=sflag, size = 0x4, scoped, tag = 'scoped memory for tpu_custom_call.1']
    #allocation4 [shape = 's32[1]{0}', space=sflag, size = 0x4, scoped, tag = 'scoped memory for tpu_custom_call.1']
    #allocation5 [shape = 'u8[8192]{0}', space=vmem, size = 0x2000, scoped, tag = 'output window, operand 0, single buffered']
    %7 = vsyncpa [#allocation3], 0
    %8 = vsyncpa [#allocation4], 0
    // Predicated region
    $region2: #{tpu_custom_call.1} parent=1 // pred_check
      _
    $region3: #{tpu_custom_call.1} parent=1 // pred_check_branch
      %10 = sbr.rel (0) target = $region5
    $region4: #{tpu_custom_call.1} parent=1 // pred_region
      %s12 = ssub.s32 256, 256
      %13 = vsyncadd [#allocation3], %s12
      %s14 = sshll.u32 [#allocation2], 4
      %s15 = int_to_ptr.vmem [resolvable:$true] %s14
      %20 = dma.hbm_to_vmem [thread:$0]  %s0, 256, %s15, [#allocation3], 128, 128, 8
    $region5: #{tpu_custom_call.1} parent=1 // pred_fallthru
      _
    // Predicated region
    $region6: #{tpu_custom_call.1} parent=1 // pred_check
      _
    $region7: #{tpu_custom_call.1} parent=1 // pred_check_branch
      %22 = sbr.rel (0) target = $region9
    $region8: #{tpu_custom_call.1} parent=1 // pred_region
      _
    $region9: #{tpu_custom_call.1} parent=1 // pred_fallthru
      _
    // Predicated region
    $region10: #{tpu_custom_call.1} parent=1 // pred_check
      _
    $region11: #{tpu_custom_call.1} parent=1 // pred_check_branch
      %24 = sbr.rel (0) target = $region13
    $region12: #{tpu_custom_call.1} parent=1 // pred_region
      %25 = dma.done [#allocation3], 256
    $region13: #{tpu_custom_call.1} parent=1 // pred_fallthru
      _
    %v26 = vld [vmem:[#allocation2] sm:$0xff]
    %v27 = vld [vmem:[#allocation2 + $0x8] sm:$0xff]
    %v28 = vld [vmem:[%s1] sm:$0x1]
    %v29 = vld [vmem:[%s1 + $0x1] sm:$0x1]
    %v32 = vlaneseq
    %v33 = vshrl.u32 %v32, 7
    %v34 = vsub.s32 0, %v33
    %v35 = vrot.slane %v28, %v34
    %v36 = vlaneseq
    %v37 = vshrl.u32 %v36, 7
    %v38 = vsub.s32 0, %v37
    %v39 = vrot.slane %v29, %v38
    %40 = vset.pattern.permute.xlu0 0
    %41 = vperm.xlu0 %40, %v35
    %v42 = vpop.permute.xlu0 %41
    %44 = vset.pattern.permute.xlu0 0
    %45 = vperm.xlu0 %44, %v39
    %v46 = vpop.permute.xlu0 %45
    %v48 = vmul.f32 %v26, %v42
    %v49 = vmul.f32 %v27, %v46
    %50 = vst [vmem:[#allocation5] sm:$0xff] %v48
    %51 = vst [vmem:[#allocation5 + $0x8] sm:$0xff] %v49
    // Predicated region
    $region14: #{tpu_custom_call.1} parent=1 // pred_check
      _
    $region15: #{tpu_custom_call.1} parent=1 // pred_check_branch
      %53 = sbr.rel (0) target = $region17
    $region16: #{tpu_custom_call.1} parent=1 // pred_region
      %s55 = ssub.s32 256, 256
      %56 = vsyncadd [#allocation4], %s55
      %s57 = sshll.u32 [#allocation5], 4
      %s58 = int_to_ptr.vmem [resolvable:$true] %s57
      %63 = dma.vmem_to_hbm [thread:$0]  %s58, 256, %s2, [#allocation4], 128, 128, 8
    $region17: #{tpu_custom_call.1} parent=1 // pred_fallthru
      _
    // Predicated region
    $region18: #{tpu_custom_call.1} parent=1 // pred_check
      _
    $region19: #{tpu_custom_call.1} parent=1 // pred_check_branch
      %65 = sbr.rel (0) target = $region21
    $region20: #{tpu_custom_call.1} parent=1 // pred_region
      %66 = dma.done [#allocation4], 256
    $region21: #{tpu_custom_call.1} parent=1 // pred_fallthru
      _
    %67 = vsyncpa [#allocation3], 1
    %68 = vsyncpa [#allocation4], 1

</llo_original>
